<compile_context>
chip_gen: v6e
topology: v6e:2x2x1
jax: 0.10.0
libtpu: 0.0.40
codegen_flags: <defaults>
</compile_context>

<pallas_src>
import math
import functools

import jax
import jax.numpy as jnp
from jax.experimental import pallas as pl
from jax.experimental.pallas import tpu as pltpu


# ----------------------------------------------------------------------------- helpers
def _round_up(n, m):
    return ((n + m - 1) // m) * m


def _same_pad(i, k, s, d=1):
    # identical to Conv2dSame/MaxPool2dSame.calc_same_pad in the PyTorch module
    return max((math.ceil(i / s) - 1) * s + (k - 1) * d + 1 - i, 0)


def _pad2(x, rows, cols, dtype):
    """Cast + zero-pad a 2-D array to (rows, cols)."""
    r, c = x.shape
    x = x.astype(dtype)
    if (r, c) != (rows, cols):
        x = jnp.pad(x, ((0, rows - r), (0, cols - c)))
    return x


# ----------------------------------------------------------------------------- Pallas kernels
def _mm_kernel(a_ref, b_ref, bias_ref, o_ref, acc_ref, *, slope):
    """Tiled matmul with BN-folded bias + optional LeakyReLU epilogue."""
    @pl.when(pl.program_id(2) == 0)
    def _():
        acc_ref[...] = jnp.zeros_like(acc_ref)

    acc_ref[...] += jnp.dot(a_ref[...], b_ref[...],
                            preferred_element_type=jnp.float32)

    @pl.when(pl.program_id(2) == pl.num_programs(2) - 1)
    def _():
        y = acc_ref[...] + bias_ref[...]
        if slope is not None:
            y = jnp.where(y >= 0, y, slope * y)
        o_ref[...] = y


def _mm_res_kernel(a_ref, b_ref, bias_ref, r_ref, o_ref, acc_ref, *, slope):
    """Tiled matmul with bias + residual add + LeakyReLU fused in the epilogue."""
    @pl.when(pl.program_id(2) == 0)
    def _():
        acc_ref[...] = jnp.zeros_like(acc_ref)

    acc_ref[...] += jnp.dot(a_ref[...], b_ref[...],
                            preferred_element_type=jnp.float32)

    @pl.when(pl.program_id(2) == pl.num_programs(2) - 1)
    def _():
        y = acc_ref[...] + bias_ref[...] + r_ref[...]
        if slope is not None:
            y = jnp.where(y >= 0, y, slope * y)
        o_ref[...] = y


def _maxpool_kernel(*refs):
    """Running elementwise max over k*k window views (no stacked tensor)."""
    out_ref = refs[-1]
    m = refs[0][...]
    for r in refs[1:-1]:
        m = jnp.maximum(m, r[...])
    out_ref[...] = m


def _head_kernel(x_ref, w_ref, b_ref, o_ref, *, inv_hw, valid):
    """Fused global-average-pool + dense + softmax."""
    pooled = jnp.sum(x_ref[...], axis=1) * inv_hw                    # (Nb, Cp)
    logits = jnp.dot(pooled, w_ref[...],
                     preferred_element_type=jnp.float32) + b_ref[...]
    col = jax.lax.broadcasted_iota(jnp.int32, logits.shape, 1)
    mask = col < valid
    z = jnp.where(mask, logits, -jnp.inf)
    m = jnp.max(z, axis=1, keepdims=True)
    e = jnp.where(mask, jnp.exp(z - m), 0.0)
    o_ref[...] = e / jnp.sum(e, axis=1, keepdims=True)


# ----------------------------------------------------------------------------- Pallas wrappers
def fused_matmul(a, b, bias, *, slope=None, residual=None,
                 bm_max=256, bn_max=256, bk_max=512):
    """(M,K)@(K,N) + bias, with optional residual add and LeakyReLU epilogue.

    Tiled + software-pipelined MXU matmul.  A/B are fed as bf16 (MXU native on
    v6e/v7x, fine on v5e), accumulation and all epilogue math in f32.
    Tile sizes (<=256x256x512, bf16 in / f32 acc) keep the double-buffered
    working set ~1-2 MiB -> well inside scoped VMEM on all generations
    (v5e 16 MiB, v6e/v7x 32 MiB scoped, v7x 64 MiB physical).
    """
    M, K = a.shape
    K2, N = b.shape
    assert K == K2

    bm = min(bm_max, _round_up(M, 16))     # 16: bf16 sublane packing
    bk = min(bk_max, _round_up(K, 128))
    bn = min(bn_max, _round_up(N, 128))
    Mp, Kp, Np = _round_up(M, bm), _round_up(K, bk), _round_up(N, bn)

    ap = _pad2(a, Mp, Kp, jnp.bfloat16)
    bp = _pad2(b, Kp, Np, jnp.bfloat16)
    biasp = _pad2(bias.astype(jnp.float32).reshape(1, N), 1, Np, jnp.float32)

    grid = (Mp // bm, Np // bn, Kp // bk)

    in_specs = [
        pl.BlockSpec((bm, bk), lambda i, j, k: (i, k)),
        pl.BlockSpec((bk, bn), lambda i, j, k: (k, j)),
        pl.BlockSpec((1, bn), lambda i, j, k: (0, j)),   # constant in k -> fetched once
    ]
    operands = [ap, bp, biasp]

    if residual is not None:
        rp = _pad2(residual, Mp, Np, jnp.float32)
        in_specs.append(pl.BlockSpec((bm, bn), lambda i, j, k: (i, j)))
        operands.append(rp)
        kernel = functools.partial(_mm_res_kernel, slope=slope)
    else:
        kernel = functools.partial(_mm_kernel, slope=slope)

    out = pl.pallas_call(
        kernel,
        out_shape=jax.ShapeDtypeStruct((Mp, Np), jnp.float32),
        grid_spec=pltpu.PrefetchScalarGridSpec(
            num_scalar_prefetch=0,
            grid=grid,
            in_specs=in_specs,
            out_specs=pl.BlockSpec((bm, bn), lambda i, j, k: (i, j)),
            scratch_shapes=[pltpu.VMEM((bm, bn), jnp.float32)],
        ),
        compiler_params=pltpu.CompilerParams(
            dimension_semantics=("parallel", "parallel", "arbitrary")),
    )(*operands)
    return out[:M, :N]


def conv_bn_act(x, conv_params, bn_params=None, *, slope=None, stride=(1, 1),
                residual=None, eps=1e-5):
    """TF-style 'same' conv (Conv2dSame) with BatchNorm folded into the weights
    and LeakyReLU / residual-add fused into the matmul epilogue.

    x: NHWC; conv weight in torch layout (Cout, Cin, KH, KW).
    """
    w, b = conv_params
    if bn_params is not None:
        gamma, beta, mean, var = bn_params
        scale = gamma / jnp.sqrt(var + eps)
        shift = beta - mean * scale
        w = w * scale[:, None, None, None]
        b = b * scale + shift

    N, H, W, Cin = x.shape
    Cout, _, KH, KW = w.shape
    sh, sw = stride

    if KH == 1 and KW == 1:
        # 1x1 conv: no padding needed ('same' pad is 0), im2col == (strided) reshape.
        xs = x if (sh, sw) == (1, 1) else x[:, ::sh, ::sw, :]
        OH, OW = xs.shape[1], xs.shape[2]
        A = xs.reshape(N * OH * OW, Cin)
    else:
        ph, pw = _same_pad(H, KH, sh), _same_pad(W, KW, sw)
        xp = x
        if ph > 0 or pw > 0:
            xp = jnp.pad(x, ((0, 0), (ph // 2, ph - ph // 2),
                             (pw // 2, pw - pw // 2), (0, 0)))
        Hp, Wp = xp.shape[1], xp.shape[2]
        OH, OW = (Hp - KH) // sh + 1, (Wp - KW) // sw + 1

        # im2col (XLA glue), patch order (kh, kw, cin) matches the weight reshape.
        # TODO(synk): drive (kh, kw) as grid reduction axes indexing the padded NHWC
        #             input directly (no im2col materialization); needs strided/offset
        #             index_maps beyond plain BlockSpec for strided convs.
        cols = []
        for kh in range(KH):
            for kw in range(KW):
                cols.append(xp[:, kh: kh + sh * OH: sh, kw: kw + sw * OW: sw, :])
        patches = jnp.stack(cols, axis=3)                   # (N, OH, OW, KH*KW, Cin)
        A = patches.reshape(N * OH * OW, KH * KW * Cin)

    B = jnp.transpose(w, (2, 3, 1, 0)).reshape(KH * KW * Cin, Cout)

    R = residual.reshape(N * OH * OW, Cout) if residual is not None else None
    out = fused_matmul(A, B, b, slope=slope, residual=R)
    return out.reshape(N, OH, OW, Cout)


def maxpool2d_same(x, k=3, s=2):
    """MaxPool2dSame.  Matches the reference: F.pad (constant 0) then max_pool2d."""
    N, H, W, C = x.shape
    ph, pw = _same_pad(H, k, s), _same_pad(W, k, s)
    xp = x
    if ph > 0 or pw > 0:
        xp = jnp.pad(x, ((0, 0), (ph // 2, ph - ph // 2),
                         (pw // 2, pw - pw // 2), (0, 0)))
    Hp, Wp = xp.shape[1], xp.shape[2]
    OH, OW = (Hp - k) // s + 1, (Wp - k) // s + 1
    M = N * OH * OW
    # k*k strided window views passed as separate refs; running max in-kernel
    # (no (k*k, M, C) stacked tensor, no extra pad/slice copies).
    views = []
    for kh in range(k):
        for kw in range(k):
            views.append(
                xp[:, kh: kh + s * OH: s, kw: kw + s * OW: s, :].reshape(M, C))
    out = pl.pallas_call(
        _maxpool_kernel,
        out_shape=jax.ShapeDtypeStruct((M, C), jnp.float32),
        grid=(1,),
        in_specs=[pl.BlockSpec((M, C), lambda i: (0, 0)) for _ in views],
        out_specs=pl.BlockSpec((M, C), lambda i: (0, 0)),
    )(*views)
    return out.reshape(N, OH, OW, C)


def classification_head(x, dense_w, dense_b):
    """Fused AdaptiveAvgPool2d((1,1)) + flatten + Linear + Softmax in one kernel.

    x: NHWC, dense_w: (L, C) torch layout.
    """
    N, H, W, C = x.shape
    L = dense_w.shape[0]
    HW = H * W
    Nb, HWp = _round_up(N, 8), _round_up(HW, 8)
    Cp, Lp = _round_up(C, 128), _round_up(L, 128)

    xp = jnp.pad(x.reshape(N, HW, C).astype(jnp.float32),
                 ((0, Nb - N), (0, HWp - HW), (0, Cp - C)))
    wp = _pad2(dense_w.T, Cp, Lp, jnp.float32)
    bp = _pad2(dense_b.reshape(1, L), 1, Lp, jnp.float32)

    out = pl.pallas_call(
        functools.partial(_head_kernel, inv_hw=1.0 / HW, valid=L),
        out_shape=jax.ShapeDtypeStruct((Nb, Lp), jnp.float32),
        grid=(1,),
        in_specs=[
            pl.BlockSpec((Nb, HWp, Cp), lambda i: (0, 0, 0)),
            pl.BlockSpec((Cp, Lp), lambda i: (0, 0)),
            pl.BlockSpec((1, Lp), lambda i: (0, 0)),
        ],
        out_specs=pl.BlockSpec((Nb, Lp), lambda i: (0, 0)),
    )(xp, wp, bp)
    return out[:N, :L]


# ----------------------------------------------------------------------------- parameter init
def _init_conv(key, cout, cin, kh, kw):
    k1, k2 = jax.random.split(key)
    fan_in = cin * kh * kw
    w = jax.random.normal(k1, (cout, cin, kh, kw), jnp.float32) / math.sqrt(fan_in)
    b = 0.01 * jax.random.normal(k2, (cout,), jnp.float32)
    return w, b


def _init_bn(key, c):
    k1, k2 = jax.random.split(key)
    gamma = jnp.ones((c,), jnp.float32)
    beta = jnp.zeros((c,), jnp.float32)
    mean = 0.1 * jax.random.normal(k1, (c,), jnp.float32)
    var = 1.0 + 0.1 * jnp.abs(jax.random.normal(k2, (c,), jnp.float32))
    return gamma, beta, mean, var


def build_params(key, input_channel_size, number_of_classification_labels,
                 layers, residual_block_schedule, lowest_resolution):
    # TODO(synk): cardinality > 1 (grouped conv / ResNeXt) and squeeze_and_excite
    #             variants are not implemented; default cardinality=1, SE=False path only.
    counter = [0]

    def nk():
        counter[0] += 1
        return jax.random.fold_in(key, counter[0])

    params = {}
    n_filters = lowest_resolution
    params["init_conv"] = _init_conv(nk(), n_filters, input_channel_size, 7, 7)
    params["init_bn"] = _init_bn(nk(), n_filters)

    blocks = []
    for i in range(len(layers)):
        n_in = lowest_resolution * 2 ** layers[i]
        n_out = 2 * n_in
        for j in range(residual_block_schedule[i]):
            project = (i == 0 and j == 0)
            strides = (2, 2) if (i > 0 and j == 0) else (1, 1)
            blk = {
                "conv1": _init_conv(nk(), n_in, n_filters, 1, 1),
                "bn1": _init_bn(nk(), n_in),
                "conv2": _init_conv(nk(), n_in, n_in, 3, 3),
                "bn2": _init_bn(nk(), n_in),
                "conv3": _init_conv(nk(), n_out, n_in, 1, 1),
                "bn3": _init_bn(nk(), n_out),
                "strides": strides,
            }
            if project or strides != (1, 1):
                blk["shortcut_conv"] = _init_conv(nk(), n_out, n_filters, 1, 1)
                blk["shortcut_bn"] = _init_bn(nk(), n_out)
            blocks.append(blk)
            n_filters = n_out
    params["blocks"] = blocks

    kd = nk()
    params["dense_w"] = jax.random.normal(
        kd, (number_of_classification_labels, n_filters), jnp.float32
    ) / math.sqrt(n_filters)
    params["dense_b"] = jnp.zeros((number_of_classification_labels,), jnp.float32)
    return params


# ----------------------------------------------------------------------------- forward
def resnet_forward(params, x_nchw):
    # layout: input NCHW (PyTorch) -> NHWC internally
    x = jnp.transpose(x_nchw, (0, 2, 3, 1)).astype(jnp.float32)

    # stem: conv7x7/s2 + BN + LeakyReLU fused into one matmul, then maxpool
    x = conv_bn_act(x, params["init_conv"], params["init_bn"],
                    slope=0.3, stride=(2, 2))
    x = maxpool2d_same(x, k=3, s=2)

    for blk in params["blocks"]:
        shortcut = x
        y = conv_bn_act(x, blk["conv1"], blk["bn1"], slope=0.3, stride=(1, 1))
        y = conv_bn_act(y, blk["conv2"], blk["bn2"], slope=0.3,
                        stride=blk["strides"])
        if "shortcut_conv" in blk:
            shortcut = conv_bn_act(shortcut, blk["shortcut_conv"],
                                   blk["shortcut_bn"], slope=None,
                                   stride=blk["strides"])
        # conv3 + BN + residual add + LeakyReLU(0.3) fused in one epilogue
        x = conv_bn_act(y, blk["conv3"], blk["bn3"], slope=0.3, stride=(1, 1),
                        residual=shortcut)

    # fused global-average-pool + dense + softmax (classification mode)
    return classification_head(x, params["dense_w"], params["dense_b"])


# ----------------------------------------------------------------------------- main
if __name__ == "__main__":
    key = jax.random.PRNGKey(0)

    # Small configuration consistent with the module's constructor.
    input_channel_size = 4
    number_of_classification_labels = 10
    layers = (1, 2)
    residual_block_schedule = (1, 1)
    lowest_resolution = 8

    params = build_params(
        jax.random.fold_in(key, 1),
        input_channel_size,
        number_of_classification_labels,
        layers,
        residual_block_schedule,
        lowest_resolution,
    )

    x = jax.random.normal(jax.random.fold_in(key, 2), (2, 4, 16, 16), jnp.float32)

    out = resnet_forward(params, x)
    out = jax.block_until_ready(out)

    assert out.shape == (2, number_of_classification_labels)
    assert bool(jnp.all(jnp.isfinite(out)))
    assert bool(jnp.allclose(jnp.sum(out, axis=1), 1.0, atol=1e-4))
    print("KERNEL_OK")
</pallas_src>

<mosaic_0001>
module attributes {stable_mosaic.version = 11 : i64} {
  func.func @_mm_kernel(%arg0: i32, %arg1: i32, %arg2: i32, %arg3: memref<128x256xbf16, #tpu.memory_space<vmem>>, %arg4: memref<256x128xbf16, #tpu.memory_space<vmem>>, %arg5: memref<1x128xf32, #tpu.memory_space<vmem>>, %arg6: memref<128x128xf32, #tpu.memory_space<vmem>>, %arg7: memref<128x128xf32, #tpu.memory_space<vmem>>) attributes {dimension_semantics = [#tpu.dimension_semantics<parallel>, #tpu.dimension_semantics<parallel>, #tpu.dimension_semantics<arbitrary>], iteration_bounds = array<i64: 1, 1, 1>, scalar_prefetch = 0 : i64, scratch_operands = 1 : i64, tpu.core_type = #tpu.core_type<tc>, window_params = [{transform_indices = @transform_0, window_bounds = array<i64: 128, 256>}, {transform_indices = @transform_1, window_bounds = array<i64: 256, 128>}, {transform_indices = @transform_2, window_bounds = array<i64: 1, 128>}, {transform_indices = @transform_3, window_bounds = array<i64: 128, 128>}]} {
    %c0_i32 = arith.constant 0 : i32
    %0 = arith.cmpi eq, %arg2, %c0_i32 : i32
    %1 = arith.extui %0 : i1 to i32
    %c0_i32_0 = arith.constant 0 : i32
    %2 = arith.cmpi ne, %1, %c0_i32_0 : i32
    scf.if %2 {
      %cst_10 = arith.constant 0.000000e+00 : f32
      %12 = vector.broadcast %cst_10 : f32 to vector<128x128xf32>
      %c0_11 = arith.constant 0 : index
      %c0_12 = arith.constant 0 : index
      %13 = vector.load %arg7[%c0_11, %c0_12] : memref<128x128xf32, #tpu.memory_space<vmem>>, vector<128x128xf32>
      tpu.vector_store %arg7[%c0_11, %c0_12], %12 {strides = array<i32>} : memref<128x128xf32, #tpu.memory_space<vmem>>, vector<128x128xf32>,
    } else {
    }
    %c0 = arith.constant 0 : index
    %c0_1 = arith.constant 0 : index
    %3 = vector.load %arg7[%c0, %c0_1] : memref<128x128xf32, #tpu.memory_space<vmem>>, vector<128x128xf32>
    %c0_2 = arith.constant 0 : index
    %c0_3 = arith.constant 0 : index
    %4 = vector.load %arg3[%c0_2, %c0_3] : memref<128x256xbf16, #tpu.memory_space<vmem>>, vector<128x256xbf16>
    %c0_4 = arith.constant 0 : index
    %c0_5 = arith.constant 0 : index
    %5 = vector.load %arg4[%c0_4, %c0_5] : memref<256x128xbf16, #tpu.memory_space<vmem>>, vector<256x128xbf16>
    %cst = arith.constant dense<0.000000e+00> : vector<128x128xf32>
    %6 = tpu.matmul %4, %5, %cst {dimension_numbers = #tpu.dot_dimension_numbers<[1], [0], [0], [1], [0, 0, 1, 1], [], []>} : vector<128x256xbf16>, vector<256x128xbf16>, vector<128x128xf32> -> vector<128x128xf32>
    %7 = arith.addf %3, %6 : vector<128x128xf32>
    %c0_6 = arith.constant 0 : index
    %c0_7 = arith.constant 0 : index
    %8 = vector.load %arg7[%c0_6, %c0_7] : memref<128x128xf32, #tpu.memory_space<vmem>>, vector<128x128xf32>
    tpu.vector_store %arg7[%c0_6, %c0_7], %7 {strides = array<i32>} : memref<128x128xf32, #tpu.memory_space<vmem>>, vector<128x128xf32>,
    %c0_i32_8 = arith.constant 0 : i32
    %9 = arith.cmpi eq, %arg2, %c0_i32_8 : i32
    %10 = arith.extui %9 : i1 to i32
    %c0_i32_9 = arith.constant 0 : i32
    %11 = arith.cmpi ne, %10, %c0_i32_9 : i32
    scf.if %11 {
      %c0_10 = arith.constant 0 : index
      %c0_11 = arith.constant 0 : index
      %12 = vector.load %arg7[%c0_10, %c0_11] : memref<128x128xf32, #tpu.memory_space<vmem>>, vector<128x128xf32>
      %c0_12 = arith.constant 0 : index
      %c0_13 = arith.constant 0 : index
      %13 = vector.load %arg5[%c0_12, %c0_13] : memref<1x128xf32, #tpu.memory_space<vmem>>, vector<1x128xf32>
      %14 = vector.broadcast %13 : vector<1x128xf32> to vector<128x128xf32>
      %15 = arith.addf %12, %14 : vector<128x128xf32>
      %cst_14 = arith.constant 0.000000e+00 : f32
      %16 = vector.broadcast %cst_14 : f32 to vector<128x128xf32>
      %17 = arith.cmpf oge, %15, %16 : vector<128x128xf32>
      %cst_15 = arith.constant 3.000000e-01 : f32
      %18 = vector.broadcast %cst_15 : f32 to vector<128x128xf32>
      %19 = arith.mulf %18, %15 : vector<128x128xf32>
      %20 = arith.select %17, %15, %19 : vector<128x128xi1>, vector<128x128xf32>
      %c0_16 = arith.constant 0 : index
      %c0_17 = arith.constant 0 : index
      %21 = vector.load %arg6[%c0_16, %c0_17] : memref<128x128xf32, #tpu.memory_space<vmem>>, vector<128x128xf32>
      tpu.vector_store %arg6[%c0_16, %c0_17], %20 {strides = array<i32>} : memref<128x128xf32, #tpu.memory_space<vmem>>, vector<128x128xf32>,
    } else {
    }
    return
  }
  func.func @transform_0(%arg0: i32, %arg1: i32, %arg2: i32) -> (i32, i32) {
    %c0_i32 = arith.constant 0 : i32
    return %arg0, %arg2 : i32, i32
  }
  func.func @transform_1(%arg0: i32, %arg1: i32, %arg2: i32) -> (i32, i32) {
    %c0_i32 = arith.constant 0 : i32
    return %arg2, %arg1 : i32, i32
  }
  func.func @transform_2(%arg0: i32, %arg1: i32, %arg2: i32) -> (i32, i32) {
    %c0_i32 = arith.constant 0 : i32
    %c0_i32_0 = arith.constant 0 : i32
    return %c0_i32, %arg1 : i32, i32
  }
  func.func @transform_3(%arg0: i32, %arg1: i32, %arg2: i32) -> (i32, i32) {
    %c0_i32 = arith.constant 0 : i32
    return %arg0, %arg1 : i32, i32
  }
}

</mosaic_0001>

<llo_original>
// kernel: tpu_custom_call.1
$region0: #{tpu_custom_call.1}
  #allocation0 [shape = 'u32[]', space=smem, size = 0x4, offset = 0x4, fixed_abs, tag = 'smem constant byte address 0x4 - core index']
  #allocation1 [shape = 'u32[144,128]{1,0:T(1,128)}', space=vmem, size = 0x12000, scoped, tag = 'internal scratch']
  #allocation2 [shape = 'f32[128,128]{1,0:T(8,128)}', space=vmem, size = 0x10000, scoped, tag = 'scratch operand']
  %s0 = inlined_call_operand.hbm [shape: bf16[128,256], index: 0, kind: input, shape index: {}]
  %s1 = inlined_call_operand.hbm [shape: bf16[256,128], index: 1, kind: input, shape index: {}]
  %s2 = inlined_call_operand.vmem [shape: f32[1,128], index: 2, kind: input, shape index: {}]
  %s3 = inlined_call_operand.hbm [shape: f32[128,128], index: 3, kind: output, shape index: {}]
  %s4 = sld [smem:[#allocation0]]
  $region38: #{tpu_custom_call.1} parent=0
    _
  %s6 = ssub.s32 1, %s4
  %s7 = scalar_select 0, %s6, %s4
  $region1: #{tpu_custom_call.1} parent=0
    #allocation3 [shape = 'u8[65536]{0}', space=vmem, size = 0x10000, scoped, tag = 'input window, operand 0, single buffered']
    #allocation4 [shape = 's32[1]{0}', space=sflag, size = 0x4, scoped, tag = 'scoped memory for tpu_custom_call.1']
    #allocation5 [shape = 's32[1]{0}', space=sflag, size = 0x4, scoped, tag = 'scoped memory for tpu_custom_call.1']
    #allocation6 [shape = 'u8[65536]{0}', space=vmem, size = 0x10000, scoped, tag = 'input window, operand 1, single buffered']
    #allocation7 [shape = 's32[1]{0}', space=sflag, size = 0x4, scoped, tag = 'scoped memory for tpu_custom_call.1']
    #allocation8 [shape = 'u8[65536]{0}', space=vmem, size = 0x10000, scoped, tag = 'output window, operand 0, single buffered']
    %8 = vsyncpa [#allocation4], 0
    %9 = vsyncpa [#allocation7], 0
    %10 = vsyncpa [#allocation5], 0
    // Predicated region
    $region2: #{tpu_custom_call.1} parent=1 // pred_check
      _
    $region3: #{tpu_custom_call.1} parent=1 // pred_check_branch
      %12 = sbr.rel (0) target = $region5
    $region4: #{tpu_custom_call.1} parent=1 // pred_region
      %s14 = ssub.s32 2048, 2048
      %15 = vsyncadd [#allocation4], %s14
      %s16 = sshll.u32 [#allocation3], 4
      %s17 = int_to_ptr.vmem [resolvable:$true] %s16
      %22 = dma.hbm_to_vmem [thread:$0]  %s0, 2048, %s17, [#allocation4], 128, 128, 8
    $region5: #{tpu_custom_call.1} parent=1 // pred_fallthru
      _
    // Predicated region
    $region6: #{tpu_custom_call.1} parent=1 // pred_check
      _
    $region7: #{tpu_custom_call.1} parent=1 // pred_check_branch
      %24 = sbr.rel (0) target = $region9
    $region8: #{tpu_custom_call.1} parent=1 // pred_region
      %s26 = ssub.s32 2048, 2048
      %27 = vsyncadd [#allocation7], %s26
      %s28 = sshll.u32 [#allocation6], 4
      %s29 = int_to_ptr.vmem [resolvable:$true] %s28
      %34 = dma.hbm_to_vmem [thread:$0]  %s1, 2048, %s29, [#allocation7], 64, 64, 4
    $region9: #{tpu_custom_call.1} parent=1 // pred_fallthru
      _
    // Predicated region
    $region10: #{tpu_custom_call.1} parent=1 // pred_check
      _
    $region11: #{tpu_custom_call.1} parent=1 // pred_check_branch
      %36 = sbr.rel (0) target = $region13
    $region12: #{tpu_custom_call.1} parent=1 // pred_region
      _
    $region13: #{tpu_custom_call.1} parent=1 // pred_fallthru
      _
    // Predicated region
    $region14: #{tpu_custom_call.1} parent=1 // pred_check
      _
    $region15: #{tpu_custom_call.1} parent=1 // pred_check_branch
      %38 = sbr.rel (0) target = $region17
    $region16: #{tpu_custom_call.1} parent=1 // pred_region
      %39 = dma.done [#allocation4], 2048
    $region17: #{tpu_custom_call.1} parent=1 // pred_fallthru
      _
    // Predicated region
    $region18: #{tpu_custom_call.1} parent=1 // pred_check
      _
    $region19: #{tpu_custom_call.1} parent=1 // pred_check_branch
      %41 = sbr.rel (0) target = $region21
    $region20: #{tpu_custom_call.1} parent=1 // pred_region
      %42 = dma.done [#allocation7], 2048
    $region21: #{tpu_custom_call.1} parent=1 // pred_fallthru
      _
    %p44 = scmp.eq.s32.totalorder 0, 0
    // Predicated region
    $region22: #{tpu_custom_call.1} parent=1 // pred_check
      %p45 = pneg %p44
    $region23: #{tpu_custom_call.1} parent=1 // pred_check_branch
      %47 = sbr.rel (%p45) target = $region25
    $region24: #{tpu_custom_call.1} parent=1 // pred_region
      %48 = vst [vmem:[#allocation2] sm:$0xff] 0.0
      %49 = vst [vmem:[#allocation2 + $0x8] sm:$0xff] 0.0
      %50 = vst [vmem:[#allocation2 + $0x10] sm:$0xff] 0.0
      %51 = vst [vmem:[#allocation2 + $0x18] sm:$0xff] 0.0
      %52 = vst [vmem:[#allocation2 + $0x20] sm:$0xff] 0.0
      %53 = vst [vmem:[#allocation2 + $0x28] sm:$0xff] 0.0
      %54 = vst [vmem:[#allocation2 + $0x30] sm:$0xff] 0.0
      %55 = vst [vmem:[#allocation2 + $0x38] sm:$0xff] 0.0
      %56 = vst [vmem:[#allocation2 + $0x40] sm:$0xff] 0.0
      %57 = vst [vmem:[#allocation2 + $0x48] sm:$0xff] 0.0
      %58 = vst [vmem:[#allocation2 + $0x50] sm:$0xff] 0.0
      %59 = vst [vmem:[#allocation2 + $0x58] sm:$0xff] 0.0
      %60 = vst [vmem:[#allocation2 + $0x60] sm:$0xff] 0.0
      %61 = vst [vmem:[#allocation2 + $0x68] sm:$0xff] 0.0
      %62 = vst [vmem:[#allocation2 + $0x70] sm:$0xff] 0.0
      %63 = vst [vmem:[#allocation2 + $0x78] sm:$0xff] 0.0
    $region25: #{tpu_custom_call.1} parent=1 // pred_fallthru
      _
    %v64 = vld [vmem:[#allocation2] sm:$0xff]
    %v65 = vld [vmem:[#allocation2 + $0x8] sm:$0xff]
    %v66 = vld [vmem:[#allocation2 + $0x10] sm:$0xff]
    %v67 = vld [vmem:[#allocation2 + $0x18] sm:$0xff]
    %v68 = vld [vmem:[#allocation2 + $0x20] sm:$0xff]
    %v69 = vld [vmem:[#allocation2 + $0x28] sm:$0xff]
    %v70 = vld [vmem:[#allocation2 + $0x30] sm:$0xff]
    %v71 = vld [vmem:[#allocation2 + $0x38] sm:$0xff]
    %v72 = vld [vmem:[#allocation2 + $0x40] sm:$0xff]
    %v73 = vld [vmem:[#allocation2 + $0x48] sm:$0xff]
    %v74 = vld [vmem:[#allocation2 + $0x50] sm:$0xff]
    %v75 = vld [vmem:[#allocation2 + $0x58] sm:$0xff]
    %v76 = vld [vmem:[#allocation2 + $0x60] sm:$0xff]
    %v77 = vld [vmem:[#allocation2 + $0x68] sm:$0xff]
    %v78 = vld [vmem:[#allocation2 + $0x70] sm:$0xff]
    %v79 = vld [vmem:[#allocation2 + $0x78] sm:$0xff]
    %v80 = vld [vmem:[#allocation3] sm:$0xff]
    %v81 = vld [vmem:[#allocation3 + $0x8] sm:$0xff]
    %v82 = vld [vmem:[#allocation3 + $0x10] sm:$0xff]
    %v83 = vld [vmem:[#allocation3 + $0x18] sm:$0xff]
    %v84 = vld [vmem:[#allocation3 + $0x20] sm:$0xff]
    %v85 = vld [vmem:[#allocation3 + $0x28] sm:$0xff]
    %v86 = vld [vmem:[#allocation3 + $0x30] sm:$0xff]
    %v87 = vld [vmem:[#allocation3 + $0x38] sm:$0xff]
    %v88 = vld [vmem:[#allocation3 + $0x40] sm:$0xff]
    %v89 = vld [vmem:[#allocation3 + $0x48] sm:$0xff]
    %v90 = vld [vmem:[#allocation3 + $0x50] sm:$0xff]
    %v91 = vld [vmem:[#allocation3 + $0x58] sm:$0xff]
    %v92 = vld [vmem:[#allocation3 + $0x60] sm:$0xff]
    %v93 = vld [vmem:[#allocation3 + $0x68] sm:$0xff]
    %v94 = vld [vmem:[#allocation3 + $0x70] sm:$0xff]
    %v95 = vld [vmem:[#allocation3 + $0x78] sm:$0xff]
    %v96 = vld [vmem:[#allocation6] sm:$0xf]
    %v97 = vld [vmem:[#allocation6 + $0x4] sm:$0xf]
    %v98 = vld [vmem:[#allocation6 + $0x8] sm:$0xf]
    %v99 = vld [vmem:[#allocation6 + $0xc] sm:$0xf]
    %v100 = vld [vmem:[#allocation6 + $0x10] sm:$0xf]
    %v101 = vld [vmem:[#allocation6 + $0x14] sm:$0xf]
    %v102 = vld [vmem:[#allocation6 + $0x18] sm:$0xf]
    %v103 = vld [vmem:[#allocation6 + $0x1c] sm:$0xf]
    %v104 = vld [vmem:[#allocation6 + $0x20] sm:$0xf]
    %v105 = vld [vmem:[#allocation6 + $0x24] sm:$0xf]
    %v106 = vld [vmem:[#allocation6 + $0x28] sm:$0xf]
    %v107 = vld [vmem:[#allocation6 + $0x2c] sm:$0xf]
    %v108 = vld [vmem:[#allocation6 + $0x30] sm:$0xf]
    %v109 = vld [vmem:[#allocation6 + $0x34] sm:$0xf]
    %v110 = vld [vmem:[#allocation6 + $0x38] sm:$0xf]
    %v111 = vld [vmem:[#allocation6 + $0x3c] sm:$0xf]
    %v112 = vld [vmem:[#allocation6 + $0x40] sm:$0xf]
    %v113 = vld [vmem:[#allocation6 + $0x44] sm:$0xf]
    %v114 = vld [vmem:[#allocation6 + $0x48] sm:$0xf]
    %v115 = vld [vmem:[#allocation6 + $0x4c] sm:$0xf]
    %v116 = vld [vmem:[#allocation6 + $0x50] sm:$0xf]
    %v117 = vld [vmem:[#allocation6 + $0x54] sm:$0xf]
    %v118 = vld [vmem:[#allocation6 + $0x58] sm:$0xf]
    %v119 = vld [vmem:[#allocation6 + $0x5c] sm:$0xf]
    %v120 = vld [vmem:[#allocation6 + $0x60] sm:$0xf]
    %v121 = vld [vmem:[#allocation6 + $0x64] sm:$0xf]
    %v122 = vld [vmem:[#allocation6 + $0x68] sm:$0xf]
    %v123 = vld [vmem:[#allocation6 + $0x6c] sm:$0xf]
    %v124 = vld [vmem:[#allocation6 + $0x70] sm:$0xf]
    %v125 = vld [vmem:[#allocation6 + $0x74] sm:$0xf]
    %v126 = vld [vmem:[#allocation6 + $0x78] sm:$0xf]
    %v127 = vld [vmem:[#allocation6 + $0x7c] sm:$0xf]
    %v144 = vunpack.c.l.b16 %v80
    %v145 = vunpack.c.h.b16 %v80
    %v146 = vunpack.c.l.b16 %v81
    %v147 = vunpack.c.h.b16 %v81
    %v148 = vunpack.c.l.b16 %v82
    %v149 = vunpack.c.h.b16 %v82
    %v150 = vunpack.c.l.b16 %v83
    %v151 = vunpack.c.h.b16 %v83
    %v152 = vunpack.c.l.b16 %v84
    %v153 = vunpack.c.h.b16 %v84
    %v154 = vunpack.c.l.b16 %v85
    %v155 = vunpack.c.h.b16 %v85
    %v156 = vunpack.c.l.b16 %v86
    %v157 = vunpack.c.h.b16 %v86
    %v158 = vunpack.c.l.b16 %v87
    %v159 = vunpack.c.h.b16 %v87
    %v160 = vunpack.c.l.b16 %v88
    %v161 = vunpack.c.h.b16 %v88
    %v162 = vunpack.c.l.b16 %v89
    %v163 = vunpack.c.h.b16 %v89
    %v164 = vunpack.c.l.b16 %v90
    %v165 = vunpack.c.h.b16 %v90
    %v166 = vunpack.c.l.b16 %v91
    %v167 = vunpack.c.h.b16 %v91
    %v168 = vunpack.c.l.b16 %v92
    %v169 = vunpack.c.h.b16 %v92
    %v170 = vunpack.c.l.b16 %v93
    %v171 = vunpack.c.h.b16 %v93
    %v172 = vunpack.c.l.b16 %v94
    %v173 = vunpack.c.h.b16 %v94
    %v174 = vunpack.c.l.b16 %v95
    %v175 = vunpack.c.h.b16 %v95
    %v176 = vpack.c.b16 %v146, %v144
    %v177 = vpack.c.b16 %v147, %v145
    %v178 = vpack.c.b16 %v150, %v148
    %v179 = vpack.c.b16 %v151, %v149
    %v180 = vpack.c.b16 %v154, %v152
    %v181 = vpack.c.b16 %v155, %v153
    %v182 = vpack.c.b16 %v158, %v156
    %v183 = vpack.c.b16 %v159, %v157
    %v184 = vpack.c.b16 %v162, %v160
    %v185 = vpack.c.b16 %v163, %v161
    %v186 = vpack.c.b16 %v166, %v164
    %v187 = vpack.c.b16 %v167, %v165
    %v188 = vpack.c.b16 %v170, %v168
    %v189 = vpack.c.b16 %v171, %v169
    %v190 = vpack.c.b16 %v174, %v172
    %v191 = vpack.c.b16 %v175, %v173
    %v240 = vunpack.c.l.b16 %v96
    %v241 = vunpack.c.l.b16 %v97
    %v242 = vunpack.c.l.b16 %v98
    %v243 = vunpack.c.l.b16 %v99
    %v244 = vunpack.c.l.b16 %v100
    %v245 = vunpack.c.l.b16 %v101
    %v246 = vunpack.c.l.b16 %v102
    %v247 = vunpack.c.l.b16 %v103
    %v248 = vunpack.c.l.b16 %v104
    %v249 = vunpack.c.l.b16 %v105
    %v250 = vunpack.c.l.b16 %v106
    %v251 = vunpack.c.l.b16 %v107
    %v252 = vunpack.c.l.b16 %v108
    %v253 = vunpack.c.l.b16 %v109
    %v254 = vunpack.c.l.b16 %v110
    %v255 = vunpack.c.l.b16 %v111
    %v256 = vunpack.c.l.b16 %v112
    %v257 = vunpack.c.l.b16 %v113
    %v258 = vunpack.c.l.b16 %v114
    %v259 = vunpack.c.l.b16 %v115
    %v260 = vunpack.c.l.b16 %v116
    %v261 = vunpack.c.l.b16 %v117
    %v262 = vunpack.c.l.b16 %v118
    %v263 = vunpack.c.l.b16 %v119
    %v264 = vunpack.c.l.b16 %v120
    %v265 = vunpack.c.l.b16 %v121
    %v266 = vunpack.c.l.b16 %v122
    %v267 = vunpack.c.l.b16 %v123
    %v268 = vunpack.c.l.b16 %v124
    %v269 = vunpack.c.l.b16 %v125
    %v270 = vunpack.c.l.b16 %v126
    %v271 = vunpack.c.l.b16 %v127
    %v272 = vpack.c.b16 %v241, %v240
    %v273 = vpack.c.b16 %v243, %v242
    %v274 = vpack.c.b16 %v245, %v244
    %v275 = vpack.c.b16 %v247, %v246
    %v276 = vpack.c.b16 %v249, %v248
    %v277 = vpack.c.b16 %v251, %v250
    %v278 = vpack.c.b16 %v253, %v252
    %v279 = vpack.c.b16 %v255, %v254
    %v280 = vpack.c.b16 %v257, %v256
    %v281 = vpack.c.b16 %v259, %v258
    %v282 = vpack.c.b16 %v261, %v260
    %v283 = vpack.c.b16 %v263, %v262
    %v284 = vpack.c.b16 %v265, %v264
    %v285 = vpack.c.b16 %v267, %v266
    %v286 = vpack.c.b16 %v269, %v268
    %v287 = vpack.c.b16 %v271, %v270
    %304 = vmatprep.subr.bf16.mxu0 0
    %305 = vmatpush1.bf16.msra.mxu0 %v279
    %306 = vmatprep.subr.bf16.mxu0 0
    %307 = vmatpush1.bf16.msra.mxu0 %v278
    %308 = vmatprep.subr.bf16.mxu0 0
    %309 = vmatpush1.bf16.msra.mxu0 %v277
    %310 = vmatprep.subr.bf16.mxu0 0
    %311 = vmatpush1.bf16.msra.mxu0 %v276
    %312 = vmatprep.subr.bf16.mxu0 0
    %313 = vmatpush1.bf16.msra.mxu0 %v275
    %314 = vmatprep.subr.bf16.mxu0 0
    %315 = vmatpush1.bf16.msra.mxu0 %v274
    %316 = vmatprep.subr.bf16.mxu0 0
    %317 = vmatpush1.bf16.msra.mxu0 %v273
    %318 = vmatprep.subr.bf16.mxu0 0
    %319 = vmatpush1.bf16.msra.mxu0 %v272
    %320 = vmatprep.subr.bf16.mxu0 0
    %321 = vmatpush2.bf16.msra.mxu0 %v287
    %322 = vmatprep.subr.bf16.mxu0 0
    %323 = vmatpush2.bf16.msra.mxu0 %v286
    %324 = vmatprep.subr.bf16.mxu0 0
    %325 = vmatpush2.bf16.msra.mxu0 %v285
    %326 = vmatprep.subr.bf16.mxu0 0
    %327 = vmatpush2.bf16.msra.mxu0 %v284
    %328 = vmatprep.subr.bf16.mxu0 0
    %329 = vmatpush2.bf16.msra.mxu0 %v283
    %330 = vmatprep.subr.bf16.mxu0 0
    %331 = vmatpush2.bf16.msra.mxu0 %v282
    %332 = vmatprep.subr.bf16.mxu0 0
    %333 = vmatpush2.bf16.msra.mxu0 %v281
    %334 = vmatprep.subr.bf16.mxu0 0
    %335 = vmatpush2.bf16.msra.mxu0 %v280
    %336 = vmatprep.mubr.bf16.mxu0 %v177
    %337 = vmatmul.mubr.bf16.gmra.mxu0 %v176
    %v338 = vpop.f32.mrf.mxu0
    %v339 = vadd.f32 0.0, %v338
    %v340 = vpop.f32.mrf.mxu0
    %v341 = vpop.f32.mrf.mxu0
    %v342 = vadd.f32 0.0, %v341
    %v343 = vpop.f32.mrf.mxu0
    %344 = vmatprep.mubr.bf16.mxu0 %v179
    %345 = vmatmul.mubr.bf16.gmra.mxu0 %v178
    %v346 = vpop.f32.mrf.mxu0
    %v347 = vadd.f32 0.0, %v346
    %v348 = vpop.f32.mrf.mxu0
    %v349 = vpop.f32.mrf.mxu0
    %v350 = vadd.f32 0.0, %v349
    %v351 = vpop.f32.mrf.mxu0
    %352 = vmatprep.mubr.bf16.mxu0 %v181
    %353 = vmatmul.mubr.bf16.gmra.mxu0 %v180
    %v354 = vpop.f32.mrf.mxu0
    %v355 = vadd.f32 0.0, %v354
    %v356 = vpop.f32.mrf.mxu0
    %v357 = vpop.f32.mrf.mxu0
    %v358 = vadd.f32 0.0, %v357
    %v359 = vpop.f32.mrf.mxu0
    %360 = vmatprep.mubr.bf16.mxu0 %v183
    %361 = vmatmul.mubr.bf16.gmra.mxu0 %v182
    %v362 = vpop.f32.mrf.mxu0
    %v363 = vadd.f32 0.0, %v362
    %v364 = vpop.f32.mrf.mxu0
    %v365 = vpop.f32.mrf.mxu0
    %v366 = vadd.f32 0.0, %v365
    %v367 = vpop.f32.mrf.mxu0
    %368 = vmatprep.mubr.bf16.mxu0 %v185
    %369 = vmatmul.mubr.bf16.gmra.mxu0 %v184
    %v370 = vpop.f32.mrf.mxu0
    %v371 = vadd.f32 0.0, %v370
    %v372 = vpop.f32.mrf.mxu0
    %v373 = vpop.f32.mrf.mxu0
    %v374 = vadd.f32 0.0, %v373
    %v375 = vpop.f32.mrf.mxu0
    %376 = vmatprep.mubr.bf16.mxu0 %v187
    %377 = vmatmul.mubr.bf16.gmra.mxu0 %v186
    %v378 = vpop.f32.mrf.mxu0
    %v379 = vadd.f32 0.0, %v378
    %v380 = vpop.f32.mrf.mxu0
    %v381 = vpop.f32.mrf.mxu0
    %v382 = vadd.f32 0.0, %v381
    %v383 = vpop.f32.mrf.mxu0
    %384 = vmatprep.mubr.bf16.mxu0 %v189
    %385 = vmatmul.mubr.bf16.gmra.mxu0 %v188
    %v386 = vpop.f32.mrf.mxu0
    %v387 = vadd.f32 0.0, %v386
    %v388 = vpop.f32.mrf.mxu0
    %v389 = vpop.f32.mrf.mxu0
    %v390 = vadd.f32 0.0, %v389
    %v391 = vpop.f32.mrf.mxu0
    %392 = vmatprep.mubr.bf16.mxu0 %v191
    %393 = vmatmul.mubr.bf16.gmra.mxu0 %v190
    %v394 = vpop.f32.mrf.mxu0
    %v395 = vadd.f32 0.0, %v394
    %v396 = vpop.f32.mrf.mxu0
    %v397 = vpop.f32.mrf.mxu0
    %v398 = vadd.f32 0.0, %v397
    %v399 = vpop.f32.mrf.mxu0
    %400 = vdwg.mxu0
    %v401 = vadd.f32 %v64, %v339
    %v402 = vadd.f32 %v65, %v342
    %v403 = vadd.f32 %v66, %v347
    %v404 = vadd.f32 %v67, %v350
    %v405 = vadd.f32 %v68, %v355
    %v406 = vadd.f32 %v69, %v358
    %v407 = vadd.f32 %v70, %v363
    %v408 = vadd.f32 %v71, %v366
    %v409 = vadd.f32 %v72, %v371
    %v410 = vadd.f32 %v73, %v374
    %v411 = vadd.f32 %v74, %v379
    %v412 = vadd.f32 %v75, %v382
    %v413 = vadd.f32 %v76, %v387
    %v414 = vadd.f32 %v77, %v390
    %v415 = vadd.f32 %v78, %v395
    %v416 = vadd.f32 %v79, %v398
    %417 = vst [vmem:[#allocation2] sm:$0xff] %v401
    %418 = vst [vmem:[#allocation2 + $0x8] sm:$0xff] %v402
    %419 = vst [vmem:[#allocation2 + $0x10] sm:$0xff] %v403
    %420 = vst [vmem:[#allocation2 + $0x18] sm:$0xff] %v404
    %421 = vst [vmem:[#allocation2 + $0x20] sm:$0xff] %v405
    %422 = vst [vmem:[#allocation2 + $0x28] sm:$0xff] %v406
    %423 = vst [vmem:[#allocation2 + $0x30] sm:$0xff] %v407
    %424 = vst [vmem:[#allocation2 + $0x38] sm:$0xff] %v408
    %425 = vst [vmem:[#allocation2 + $0x40] sm:$0xff] %v409
    %426 = vst [vmem:[#allocation2 + $0x48] sm:$0xff] %v410
    %427 = vst [vmem:[#allocation2 + $0x50] sm:$0xff] %v411
    %428 = vst [vmem:[#allocation2 + $0x58] sm:$0xff] %v412
    %429 = vst [vmem:[#allocation2 + $0x60] sm:$0xff] %v413
    %430 = vst [vmem:[#allocation2 + $0x68] sm:$0xff] %v414
    %431 = vst [vmem:[#allocation2 + $0x70] sm:$0xff] %v415
    %432 = vst [vmem:[#allocation2 + $0x78] sm:$0xff] %v416
    // Predicated region
    $region26: #{tpu_custom_call.1} parent=1 // pred_check
      %p433 = pneg %p44
    $region27: #{tpu_custom_call.1} parent=1 // pred_check_branch
      %435 = sbr.rel (%p433) target = $region29
    $region28: #{tpu_custom_call.1} parent=1 // pred_region
      %v436 = vld [vmem:[#allocation2] sm:$0xff]
      %v437 = vld [vmem:[#allocation2 + $0x8] sm:$0xff]
      %v438 = vld [vmem:[#allocation2 + $0x10] sm:$0xff]
      %v439 = vld [vmem:[#allocation2 + $0x18] sm:$0xff]
      %v440 = vld [vmem:[#allocation2 + $0x20] sm:$0xff]
      %v441 = vld [vmem:[#allocation2 + $0x28] sm:$0xff]
      %v442 = vld [vmem:[#allocation2 + $0x30] sm:$0xff]
      %v443 = vld [vmem:[#allocation2 + $0x38] sm:$0xff]
      %v444 = vld [vmem:[#allocation2 + $0x40] sm:$0xff]
      %v445 = vld [vmem:[#allocation2 + $0x48] sm:$0xff]
      %v446 = vld [vmem:[#allocation2 + $0x50] sm:$0xff]
      %v447 = vld [vmem:[#allocation2 + $0x58] sm:$0xff]
      %v448 = vld [vmem:[#allocation2 + $0x60] sm:$0xff]
      %v449 = vld [vmem:[#allocation2 + $0x68] sm:$0xff]
      %v450 = vld [vmem:[#allocation2 + $0x70] sm:$0xff]
      %v451 = vld [vmem:[#allocation2 + $0x78] sm:$0xff]
      %v452 = vld [vmem:[%s2] sm:$0x1]
      %v454 = vlaneseq
      %v455 = vshrl.u32 %v454, 7
      %v456 = vsub.s32 0, %v455
      %v457 = vrot.slane %v452, %v456
      %v459 = vadd.f32 %v436, %v457
      %v460 = vadd.f32 %v437, %v457
      %v461 = vadd.f32 %v438, %v457
      %v462 = vadd.f32 %v439, %v457
      %v463 = vadd.f32 %v440, %v457
      %v464 = vadd.f32 %v441, %v457
      %v465 = vadd.f32 %v442, %v457
      %v466 = vadd.f32 %v443, %v457
      %v467 = vadd.f32 %v444, %v457
      %v468 = vadd.f32 %v445, %v457
      %v469 = vadd.f32 %v446, %v457
      %v470 = vadd.f32 %v447, %v457
      %v471 = vadd.f32 %v448, %v457
      %v472 = vadd.f32 %v449, %v457
      %v473 = vadd.f32 %v450, %v457
      %v474 = vadd.f32 %v451, %v457
      %vm475 = vcmp.ge.f32.partialorder %v459, 0.0
      %vm476 = vcmp.ge.f32.partialorder %v460, 0.0
      %vm477 = vcmp.ge.f32.partialorder %v461, 0.0
      %vm478 = vcmp.ge.f32.partialorder %v462, 0.0
      %vm479 = vcmp.ge.f32.partialorder %v463, 0.0
      %vm480 = vcmp.ge.f32.partialorder %v464, 0.0
      %vm481 = vcmp.ge.f32.partialorder %v465, 0.0
      %vm482 = vcmp.ge.f32.partialorder %v466, 0.0
      %vm483 = vcmp.ge.f32.partialorder %v467, 0.0
      %vm484 = vcmp.ge.f32.partialorder %v468, 0.0
      %vm485 = vcmp.ge.f32.partialorder %v469, 0.0
      %vm486 = vcmp.ge.f32.partialorder %v470, 0.0
      %vm487 = vcmp.ge.f32.partialorder %v471, 0.0
      %vm488 = vcmp.ge.f32.partialorder %v472, 0.0
      %vm489 = vcmp.ge.f32.partialorder %v473, 0.0
      %vm490 = vcmp.ge.f32.partialorder %v474, 0.0
      %v491 = vmul.f32 %v459, 0.3
      %v492 = vmul.f32 %v460, 0.3
      %v493 = vmul.f32 %v461, 0.3
      %v494 = vmul.f32 %v462, 0.3
      %v495 = vmul.f32 %v463, 0.3
      %v496 = vmul.f32 %v464, 0.3
      %v497 = vmul.f32 %v465, 0.3
      %v498 = vmul.f32 %v466, 0.3
      %v499 = vmul.f32 %v467, 0.3
      %v500 = vmul.f32 %v468, 0.3
      %v501 = vmul.f32 %v469, 0.3
      %v502 = vmul.f32 %v470, 0.3
      %v503 = vmul.f32 %v471, 0.3
      %v504 = vmul.f32 %v472, 0.3
      %v505 = vmul.f32 %v473, 0.3
      %v506 = vmul.f32 %v474, 0.3
      %v507 = vsel %vm475, %v459, %v491
      %v508 = vsel %vm476, %v460, %v492
      %v509 = vsel %vm477, %v461, %v493
      %v510 = vsel %vm478, %v462, %v494
      %v511 = vsel %vm479, %v463, %v495
      %v512 = vsel %vm480, %v464, %v496
      %v513 = vsel %vm481, %v465, %v497
      %v514 = vsel %vm482, %v466, %v498
      %v515 = vsel %vm483, %v467, %v499
      %v516 = vsel %vm484, %v468, %v500
      %v517 = vsel %vm485, %v469, %v501
      %v518 = vsel %vm486, %v470, %v502
      %v519 = vsel %vm487, %v471, %v503
      %v520 = vsel %vm488, %v472, %v504
      %v521 = vsel %vm489, %v473, %v505
      %v522 = vsel %vm490, %v474, %v506
      %523 = vst [vmem:[#allocation8] sm:$0xff] %v507
      %524 = vst [vmem:[#allocation8 + $0x8] sm:$0xff] %v508
      %525 = vst [vmem:[#allocation8 + $0x10] sm:$0xff] %v509
      %526 = vst [vmem:[#allocation8 + $0x18] sm:$0xff] %v510
      %527 = vst [vmem:[#allocation8 + $0x20] sm:$0xff] %v511
      %528 = vst [vmem:[#allocation8 + $0x28] sm:$0xff] %v512
      %529 = vst [vmem:[#allocation8 + $0x30] sm:$0xff] %v513
      %530 = vst [vmem:[#allocation8 + $0x38] sm:$0xff] %v514
      %531 = vst [vmem:[#allocation8 + $0x40] sm:$0xff] %v515
      %532 = vst [vmem:[#allocation8 + $0x48] sm:$0xff] %v516
      %533 = vst [vmem:[#allocation8 + $0x50] sm:$0xff] %v517
      %534 = vst [vmem:[#allocation8 + $0x58] sm:$0xff] %v518
      %535 = vst [vmem:[#allocation8 + $0x60] sm:$0xff] %v519
      %536 = vst [vmem:[#allocation8 + $0x68] sm:$0xff] %v520
      %537 = vst [vmem:[#allocation8 + $0x70] sm:$0xff] %v521
      %538 = vst [vmem:[#allocation8 + $0x78] sm:$0xff] %v522
    $region29: #{tpu_custom_call.1} parent=1 // pred_fallthru
      _
    // Predicated region
    $region30: #{tpu_custom_call.1} parent=1 // pred_check
      _
    $region31: #{tpu_custom_call.1} parent=1 // pred_check_branch
      %540 = sbr.rel (0) target = $region33
    $region32: #{tpu_custom_call.1} parent=1 // pred_region
      %s542 = ssub.s32 2048, 2048
      %543 = vsyncadd [#allocation5], %s542
      %s544 = sshll.u32 [#allocation8], 4
      %s545 = int_to_ptr.vmem [resolvable:$true] %s544
      %550 = dma.vmem_to_hbm [thread:$0]  %s545, 2048, %s3, [#allocation5], 128, 128, 8
    $region33: #{tpu_custom_call.1} parent=1 // pred_fallthru
      _
    // Predicated region
    $region34: #{tpu_custom_call.1} parent=1 // pred_check
      _
    $region35: #{tpu_custom_call.1} parent=1 // pred_check_branch
      %552 = sbr.rel (0) target = $region37
    $region36: #{tpu_custom_call.1} parent=1 // pred_region
      %553 = dma.done [#allocation5], 2048
    $region37: #{tpu_custom_call.1} parent=1 // pred_fallthru
      _
    %554 = vsyncpa [#allocation4], 1
    %555 = vsyncpa [#allocation7], 1
    %556 = vsyncpa [#allocation5], 1

</llo_original>
